<compile_context>
chip_gen: v7x
topology: tpu7x:2x2x1
jax: 0.10.0
libtpu: 0.0.40
codegen_flags: <defaults>
</compile_context>

<pallas_src>
import functools

import jax
import jax.numpy as jnp
import numpy as np
from jax import lax
from jax.experimental import pallas as pl
from jax.experimental.pallas import tpu as pltpu

EPS = 1e-5


# ----------------------------------------------------------------------------
# Pallas kernel (one grid step = one batch slab).
# Refs (BC = per-block-batch * C, BE = per-block-batch * E):
#   x_ref    : (1, BC, HW)  input slab (channels-first, spatial flattened on lanes)
#   w1_ref   : (BE, BC)     block-diagonal 1x1 expand weight (BN1 scale folded)
#   b1_ref   : (BE, 1)      BN1 bias (batch-tiled)
#   wdw_ref  : (BE, 9)      depthwise 3x3 weights, tap-major cols (BN2 scale folded)
#   b2_ref   : (BE, 1)      BN2 bias
#   w3_ref   : (BC, BE)     block-diagonal 1x1 project weight (BN3 scale folded)
#   b3_ref   : (BC, 1)      BN3 bias
#   mask_ref : (9, HW)      per-tap boundary masks (1.0 = source pixel in bounds)
#   o_ref    : (1, BC, HW)  output slab
# ----------------------------------------------------------------------------
def _sra_kernel(x_ref, w1_ref, b1_ref, wdw_ref, b2_ref, w3_ref, b3_ref, mask_ref,
                o_ref, *, W, HW):
    x = x_ref[0]                                                      # (BC, HW)

    # ---- 1x1 expand conv (block-diag over folded batch) on the MXU + bias + ReLU ----
    h = jnp.dot(w1_ref[...], x, preferred_element_type=jnp.float32)  # (BE, HW)
    h = jnp.maximum(h + b1_ref[...], 0.0)

    # ---- 3x3 depthwise conv (padding=1): 9 lane rolls + masks + per-row weights -----
    wdw = wdw_ref[...]                                                # (BE, 9)
    terms = []
    k = 0
    for dy in (-1, 0, 1):
        for dx in (-1, 0, 1):
            s = dy * W + dx                  # flat source offset: out[p] += w_k * h[p + s]
            if dy == 0 and dx == 0:
                t = h
            else:
                t = pltpu.roll(h, shift=(-s) % HW, axis=1) * mask_ref[k:k + 1, :]
            terms.append(t * wdw[:, k:k + 1])
            k += 1
    # Pairwise tree reduction (shortens the dependent add chain vs. a serial acc).
    while len(terms) > 1:
        nxt = [terms[i] + terms[i + 1] for i in range(0, len(terms) - 1, 2)]
        if len(terms) % 2:
            nxt.append(terms[-1])
        terms = nxt
    h2 = jnp.maximum(terms[0] + b2_ref[...], 0.0)                     # (BE, HW)

    # ---- 1x1 project conv on the MXU + bias, sigmoid-gated residual ------------------
    y = jnp.dot(w3_ref[...], h2, preferred_element_type=jnp.float32) + b3_ref[...]
    o_ref[0] = x + jax.nn.sigmoid(y)


def _fold_bn(gamma, beta, mean, var):
    scale = gamma / jnp.sqrt(var + EPS)
    bias = beta - mean * scale
    return scale.astype(jnp.float32), bias.astype(jnp.float32)


def _num_parallel_blocks(n):
    # v7x has 2 TensorCores per chip: split the batch two ways so neither core idles.
    # v5e / v6e have a single TC: one grid step covering the whole batch is best.
    try:
        kind = jax.devices()[0].device_kind.lower()
    except Exception:
        kind = ""
    if ("v7" in kind or "7x" in kind) and n >= 2 and n % 2 == 0:
        return 2
    return 1


def semantic_response_adapter_pallas(x_nchw, params):
    N, C, H, W = x_nchw.shape
    E = params["w1"].shape[1]
    HW = H * W

    G = _num_parallel_blocks(N)       # grid blocks (1 on v5e/v6e, 2 on v7x)
    B = N // G                        # batch elements per grid block
    BC, BE = B * C, B * E

    # NCHW -> (G, B*C, HW): pure reshape; HW lands on the lane axis, the folded
    # (batch, channel) axis fills the sublanes (full (8,128) f32 tiles for 2x4x16x16).
    x = x_nchw.reshape(G, BC, HW).astype(jnp.float32)

    # Eval-mode BatchNorm folded into conv weights (scale) + per-channel bias.
    # TODO(synk): training-mode BatchNorm (batch statistics) is not implemented.
    s1, b1 = _fold_bn(params["g1"], params["be1"], params["m1"], params["v1"])
    s2, b2 = _fold_bn(params["g2"], params["be2"], params["m2"], params["v2"])
    s3, b3 = _fold_bn(params["g3"], params["be3"], params["m3"], params["v3"])

    w1_k = (params["w1"].T * s1[:, None]).astype(jnp.float32)        # (E, C)
    wdw_k = (params["wdw"].T * s2[:, None]).astype(jnp.float32)      # (E, 9)
    w3_k = (params["w3"].T * s3[:, None]).astype(jnp.float32)        # (C, E)

    eye_b = jnp.eye(B, dtype=jnp.float32)
    w1_blk = jnp.kron(eye_b, w1_k)                                   # (BE, BC) block-diag
    w3_blk = jnp.kron(eye_b, w3_k)                                   # (BC, BE) block-diag
    wdw_b = jnp.tile(wdw_k, (B, 1))                                  # (BE, 9)
    b1_b = jnp.tile(b1, B)[:, None]                                  # (BE, 1)
    b2_b = jnp.tile(b2, B)[:, None]                                  # (BE, 1)
    b3_b = jnp.tile(b3, B)[:, None]                                  # (BC, 1)

    # Precomputed boundary masks for the 9 depthwise taps (tap k = (dy+1)*3+(dx+1)):
    # mask[k, p] = 1.0 iff the source pixel (y+dy, x+dx) of output pixel p is in bounds.
    xs = jnp.arange(HW, dtype=jnp.int32) % W
    ys = jnp.arange(HW, dtype=jnp.int32) // W
    rows = []
    for dy in (-1, 0, 1):
        for dx in (-1, 0, 1):
            valid = ((ys + dy >= 0) & (ys + dy <= H - 1)
                     & (xs + dx >= 0) & (xs + dx <= W - 1))
            rows.append(valid.astype(jnp.float32))
    mask9 = jnp.stack(rows, axis=0)                                  # (9, HW)

    out = pl.pallas_call(
        functools.partial(_sra_kernel, W=W, HW=HW),
        out_shape=jax.ShapeDtypeStruct((G, BC, HW), jnp.float32),
        grid_spec=pltpu.PrefetchScalarGridSpec(
            num_scalar_prefetch=0,
            grid=(G,),
            in_specs=[
                pl.BlockSpec((1, BC, HW), lambda g: (g, 0, 0)),      # x slab
                pl.BlockSpec((BE, BC), lambda g: (0, 0)),            # w1 (block-diag, folded)
                pl.BlockSpec((BE, 1), lambda g: (0, 0)),             # b1
                pl.BlockSpec((BE, 9), lambda g: (0, 0)),             # depthwise weights
                pl.BlockSpec((BE, 1), lambda g: (0, 0)),             # b2
                pl.BlockSpec((BC, BE), lambda g: (0, 0)),            # w3 (block-diag, folded)
                pl.BlockSpec((BC, 1), lambda g: (0, 0)),             # b3
                pl.BlockSpec((9, HW), lambda g: (0, 0)),             # tap boundary masks
            ],
            out_specs=pl.BlockSpec((1, BC, HW), lambda g: (g, 0, 0)),
        ),
        compiler_params=pltpu.CompilerParams(dimension_semantics=("parallel",)),
    )(x, w1_blk, b1_b, wdw_b, b2_b, w3_blk, b3_b, mask9)

    return out.reshape(N, C, H, W)


# ----------------------------------------------------------------------------
# Pure-JAX / XLA reference matching the PyTorch module (NCHW, eval-mode BN).
# ----------------------------------------------------------------------------
def semantic_response_adapter_ref(x, params):
    E = params["w1"].shape[1]

    def bn(h, g, b, m, v):
        return (h - m[None, :, None, None]) / jnp.sqrt(v + EPS)[None, :, None, None] \
               * g[None, :, None, None] + b[None, :, None, None]

    dn = ("NCHW", "OIHW", "NCHW")
    hi = lax.Precision.HIGHEST

    w1_oihw = jnp.transpose(params["w1"])[:, :, None, None]                  # (E, C, 1, 1)
    h = lax.conv_general_dilated(x, w1_oihw, (1, 1), "VALID",
                                 dimension_numbers=dn, precision=hi)
    h = jnp.maximum(bn(h, params["g1"], params["be1"], params["m1"], params["v1"]), 0.0)

    wdw_oihw = jnp.transpose(params["wdw"].reshape(3, 3, E), (2, 0, 1))[:, None, :, :]  # (E,1,3,3)
    h = lax.conv_general_dilated(h, wdw_oihw, (1, 1), ((1, 1), (1, 1)),
                                 dimension_numbers=dn, feature_group_count=E,
                                 precision=hi)
    h = jnp.maximum(bn(h, params["g2"], params["be2"], params["m2"], params["v2"]), 0.0)

    w3_oihw = jnp.transpose(params["w3"])[:, :, None, None]                  # (C, E, 1, 1)
    h = lax.conv_general_dilated(h, w3_oihw, (1, 1), "VALID",
                                 dimension_numbers=dn, precision=hi)
    h = bn(h, params["g3"], params["be3"], params["m3"], params["v3"])

    return x + jax.nn.sigmoid(h)


def init_params(key, in_channels, expansion_factor=4):
    C = in_channels
    E = C * expansion_factor
    ks = jax.random.split(key, 12)
    return {
        # conv weights (w1: (C,E), wdw: tap-major (9,E), w3: (E,C))
        "w1": 0.2 * jax.random.normal(ks[0], (C, E), jnp.float32),
        "wdw": 0.2 * jax.random.normal(ks[1], (9, E), jnp.float32),
        "w3": 0.2 * jax.random.normal(ks[2], (E, C), jnp.float32),
        # BatchNorm (eval-mode running stats + affine)
        "g1": 1.0 + 0.1 * jax.random.normal(ks[3], (E,), jnp.float32),
        "be1": 0.05 * jax.random.normal(ks[4], (E,), jnp.float32),
        "m1": 0.05 * jax.random.normal(ks[5], (E,), jnp.float32),
        "v1": 1.0 + 0.1 * jax.random.uniform(ks[6], (E,), jnp.float32),
        "g2": jnp.ones((E,), jnp.float32),
        "be2": jnp.zeros((E,), jnp.float32),
        "m2": jnp.zeros((E,), jnp.float32),
        "v2": jnp.ones((E,), jnp.float32),
        "g3": 1.0 + 0.1 * jax.random.normal(ks[7], (C,), jnp.float32),
        "be3": 0.05 * jax.random.normal(ks[8], (C,), jnp.float32),
        "m3": 0.05 * jax.random.normal(ks[9], (C,), jnp.float32),
        "v3": 1.0 + 0.1 * jax.random.uniform(ks[10], (C,), jnp.float32),
    }


if __name__ == "__main__":
    # NCHW input consistent with the module: batch=2, channels=4, 16x16 spatial.
    N, C, H, W = 2, 4, 16, 16
    key = jax.random.PRNGKey(0)
    kx, kp = jax.random.split(key)
    x = jax.random.normal(kx, (N, C, H, W), jnp.float32)
    params = init_params(kp, in_channels=C, expansion_factor=4)

    fwd = jax.jit(semantic_response_adapter_pallas)
    out = jax.block_until_ready(fwd(x, params))
    ref = jax.block_until_ready(semantic_response_adapter_ref(x, params))

    assert out.shape == (N, C, H, W)
    np.testing.assert_allclose(np.asarray(out), np.asarray(ref), atol=5e-3, rtol=5e-3)
    print("KERNEL_OK")
</pallas_src>

<mosaic_0001>
module attributes {stable_mosaic.version = 11 : i64} {
  func.func @_sra_kernel(%arg0: i32, %arg1: memref<1x8x256xf32, #tpu.memory_space<vmem>>, %arg2: memref<32x8xf32, #tpu.memory_space<vmem>>, %arg3: memref<32x1xf32, #tpu.memory_space<vmem>>, %arg4: memref<32x9xf32, #tpu.memory_space<vmem>>, %arg5: memref<32x1xf32, #tpu.memory_space<vmem>>, %arg6: memref<8x32xf32, #tpu.memory_space<vmem>>, %arg7: memref<8x1xf32, #tpu.memory_space<vmem>>, %arg8: memref<9x256xf32, #tpu.memory_space<vmem>>, %arg9: memref<1x8x256xf32, #tpu.memory_space<vmem>>) attributes {dimension_semantics = [#tpu.dimension_semantics<parallel>], iteration_bounds = array<i64: 1>, scalar_prefetch = 0 : i64, scratch_operands = 0 : i64, tpu.core_type = #tpu.core_type<tc>, window_params = [{transform_indices = @transform_0, window_bounds = array<i64: 1, 8, 256>}, {pipeline_mode = #tpu.pipeline_mode<synchronous>, transform_indices = @transform_1, window_bounds = array<i64: 32, 8>}, {pipeline_mode = #tpu.pipeline_mode<synchronous>, transform_indices = @transform_2, window_bounds = array<i64: 32, 1>}, {pipeline_mode = #tpu.pipeline_mode<synchronous>, transform_indices = @transform_3, window_bounds = array<i64: 32, 9>}, {pipeline_mode = #tpu.pipeline_mode<synchronous>, transform_indices = @transform_4, window_bounds = array<i64: 32, 1>}, {pipeline_mode = #tpu.pipeline_mode<synchronous>, transform_indices = @transform_5, window_bounds = array<i64: 8, 32>}, {pipeline_mode = #tpu.pipeline_mode<synchronous>, transform_indices = @transform_6, window_bounds = array<i64: 8, 1>}, {pipeline_mode = #tpu.pipeline_mode<synchronous>, transform_indices = @transform_7, window_bounds = array<i64: 9, 256>}, {transform_indices = @transform_8, window_bounds = array<i64: 1, 8, 256>}]} {
    %c0 = arith.constant 0 : index
    %c0_0 = arith.constant 0 : index
    %c0_1 = arith.constant 0 : index
    %0 = vector.load %arg1[%c0, %c0_0, %c0_1] : memref<1x8x256xf32, #tpu.memory_space<vmem>>, vector<1x8x256xf32>
    %1 = vector.shape_cast %0 : vector<1x8x256xf32> to vector<8x256xf32>
    %c0_2 = arith.constant 0 : index
    %c0_3 = arith.constant 0 : index
    %2 = vector.load %arg2[%c0_2, %c0_3] : memref<32x8xf32, #tpu.memory_space<vmem>>, vector<32x8xf32>
    %cst = arith.constant dense<0.000000e+00> : vector<32x256xf32>
    %3 = tpu.matmul %2, %1, %cst {dimension_numbers = #tpu.dot_dimension_numbers<[1], [0], [0], [1], [0, 0, 1, 1], [], []>} : vector<32x8xf32>, vector<8x256xf32>, vector<32x256xf32> -> vector<32x256xf32>
    %c0_4 = arith.constant 0 : index
    %c0_5 = arith.constant 0 : index
    %4 = vector.load %arg3[%c0_4, %c0_5] : memref<32x1xf32, #tpu.memory_space<vmem>>, vector<32x1xf32>
    %5 = vector.broadcast %4 : vector<32x1xf32> to vector<32x256xf32>
    %6 = arith.addf %3, %5 : vector<32x256xf32>
    %cst_6 = arith.constant 0.000000e+00 : f32
    %7 = vector.broadcast %cst_6 : f32 to vector<32x256xf32>
    %8 = arith.maximumf %6, %7 : vector<32x256xf32>
    %c0_7 = arith.constant 0 : index
    %c0_8 = arith.constant 0 : index
    %9 = vector.load %arg4[%c0_7, %c0_8] : memref<32x9xf32, #tpu.memory_space<vmem>>, vector<32x9xf32>
    %c17_i32 = arith.constant 17 : i32
    %10 = tpu.dynamic_rotate %8 by %c17_i32 dim 1 : vector<32x256xf32>, i32 -> vector<32x256xf32>
    %c0_9 = arith.constant 0 : index
    %c0_10 = arith.constant 0 : index
    %11 = vector.load %arg8[%c0_9, %c0_10] : memref<9x256xf32, #tpu.memory_space<vmem>>, vector<1x256xf32>
    %12 = vector.broadcast %11 : vector<1x256xf32> to vector<32x256xf32>
    %13 = arith.mulf %10, %12 : vector<32x256xf32>
    %14 = vector.extract_strided_slice %9 {offsets = [0, 0], sizes = [32, 1], strides = [1, 1]} : vector<32x9xf32> to vector<32x1xf32>
    %15 = vector.broadcast %14 : vector<32x1xf32> to vector<32x256xf32>
    %16 = arith.mulf %13, %15 : vector<32x256xf32>
    %c16_i32 = arith.constant 16 : i32
    %17 = tpu.dynamic_rotate %8 by %c16_i32 dim 1 : vector<32x256xf32>, i32 -> vector<32x256xf32>
    %c1 = arith.constant 1 : index
    %c0_11 = arith.constant 0 : index
    %18 = vector.load %arg8[%c1, %c0_11] : memref<9x256xf32, #tpu.memory_space<vmem>>, vector<1x256xf32>
    %19 = vector.broadcast %18 : vector<1x256xf32> to vector<32x256xf32>
    %20 = arith.mulf %17, %19 : vector<32x256xf32>
    %21 = vector.extract_strided_slice %9 {offsets = [0, 1], sizes = [32, 1], strides = [1, 1]} : vector<32x9xf32> to vector<32x1xf32>
    %22 = vector.broadcast %21 : vector<32x1xf32> to vector<32x256xf32>
    %23 = arith.mulf %20, %22 : vector<32x256xf32>
    %c15_i32 = arith.constant 15 : i32
    %24 = tpu.dynamic_rotate %8 by %c15_i32 dim 1 : vector<32x256xf32>, i32 -> vector<32x256xf32>
    %c2 = arith.constant 2 : index
    %c0_12 = arith.constant 0 : index
    %25 = vector.load %arg8[%c2, %c0_12] : memref<9x256xf32, #tpu.memory_space<vmem>>, vector<1x256xf32>
    %26 = vector.broadcast %25 : vector<1x256xf32> to vector<32x256xf32>
    %27 = arith.mulf %24, %26 : vector<32x256xf32>
    %28 = vector.extract_strided_slice %9 {offsets = [0, 2], sizes = [32, 1], strides = [1, 1]} : vector<32x9xf32> to vector<32x1xf32>
    %29 = vector.broadcast %28 : vector<32x1xf32> to vector<32x256xf32>
    %30 = arith.mulf %27, %29 : vector<32x256xf32>
    %c1_i32 = arith.constant 1 : i32
    %31 = tpu.dynamic_rotate %8 by %c1_i32 dim 1 : vector<32x256xf32>, i32 -> vector<32x256xf32>
    %c3 = arith.constant 3 : index
    %c0_13 = arith.constant 0 : index
    %32 = vector.load %arg8[%c3, %c0_13] : memref<9x256xf32, #tpu.memory_space<vmem>>, vector<1x256xf32>
    %33 = vector.broadcast %32 : vector<1x256xf32> to vector<32x256xf32>
    %34 = arith.mulf %31, %33 : vector<32x256xf32>
    %35 = vector.extract_strided_slice %9 {offsets = [0, 3], sizes = [32, 1], strides = [1, 1]} : vector<32x9xf32> to vector<32x1xf32>
    %36 = vector.broadcast %35 : vector<32x1xf32> to vector<32x256xf32>
    %37 = arith.mulf %34, %36 : vector<32x256xf32>
    %38 = vector.extract_strided_slice %9 {offsets = [0, 4], sizes = [32, 1], strides = [1, 1]} : vector<32x9xf32> to vector<32x1xf32>
    %39 = vector.broadcast %38 : vector<32x1xf32> to vector<32x256xf32>
    %40 = arith.mulf %8, %39 : vector<32x256xf32>
    %c255_i32 = arith.constant 255 : i32
    %41 = tpu.dynamic_rotate %8 by %c255_i32 dim 1 : vector<32x256xf32>, i32 -> vector<32x256xf32>
    %c5 = arith.constant 5 : index
    %c0_14 = arith.constant 0 : index
    %42 = vector.load %arg8[%c5, %c0_14] : memref<9x256xf32, #tpu.memory_space<vmem>>, vector<1x256xf32>
    %43 = vector.broadcast %42 : vector<1x256xf32> to vector<32x256xf32>
    %44 = arith.mulf %41, %43 : vector<32x256xf32>
    %45 = vector.extract_strided_slice %9 {offsets = [0, 5], sizes = [32, 1], strides = [1, 1]} : vector<32x9xf32> to vector<32x1xf32>
    %46 = vector.broadcast %45 : vector<32x1xf32> to vector<32x256xf32>
    %47 = arith.mulf %44, %46 : vector<32x256xf32>
    %c241_i32 = arith.constant 241 : i32
    %48 = tpu.dynamic_rotate %8 by %c241_i32 dim 1 : vector<32x256xf32>, i32 -> vector<32x256xf32>
    %c6 = arith.constant 6 : index
    %c0_15 = arith.constant 0 : index
    %49 = vector.load %arg8[%c6, %c0_15] : memref<9x256xf32, #tpu.memory_space<vmem>>, vector<1x256xf32>
    %50 = vector.broadcast %49 : vector<1x256xf32> to vector<32x256xf32>
    %51 = arith.mulf %48, %50 : vector<32x256xf32>
    %52 = vector.extract_strided_slice %9 {offsets = [0, 6], sizes = [32, 1], strides = [1, 1]} : vector<32x9xf32> to vector<32x1xf32>
    %53 = vector.broadcast %52 : vector<32x1xf32> to vector<32x256xf32>
    %54 = arith.mulf %51, %53 : vector<32x256xf32>
    %c240_i32 = arith.constant 240 : i32
    %55 = tpu.dynamic_rotate %8 by %c240_i32 dim 1 : vector<32x256xf32>, i32 -> vector<32x256xf32>
    %c7 = arith.constant 7 : index
    %c0_16 = arith.constant 0 : index
    %56 = vector.load %arg8[%c7, %c0_16] : memref<9x256xf32, #tpu.memory_space<vmem>>, vector<1x256xf32>
    %57 = vector.broadcast %56 : vector<1x256xf32> to vector<32x256xf32>
    %58 = arith.mulf %55, %57 : vector<32x256xf32>
    %59 = vector.extract_strided_slice %9 {offsets = [0, 7], sizes = [32, 1], strides = [1, 1]} : vector<32x9xf32> to vector<32x1xf32>
    %60 = vector.broadcast %59 : vector<32x1xf32> to vector<32x256xf32>
    %61 = arith.mulf %58, %60 : vector<32x256xf32>
    %c239_i32 = arith.constant 239 : i32
    %62 = tpu.dynamic_rotate %8 by %c239_i32 dim 1 : vector<32x256xf32>, i32 -> vector<32x256xf32>
    %c8 = arith.constant 8 : index
    %c0_17 = arith.constant 0 : index
    %63 = vector.load %arg8[%c8, %c0_17] : memref<9x256xf32, #tpu.memory_space<vmem>>, vector<1x256xf32>
    %64 = vector.broadcast %63 : vector<1x256xf32> to vector<32x256xf32>
    %65 = arith.mulf %62, %64 : vector<32x256xf32>
    %66 = vector.extract_strided_slice %9 {offsets = [0, 8], sizes = [32, 1], strides = [1, 1]} : vector<32x9xf32> to vector<32x1xf32>
    %67 = vector.broadcast %66 : vector<32x1xf32> to vector<32x256xf32>
    %68 = arith.mulf %65, %67 : vector<32x256xf32>
    %69 = arith.addf %16, %23 : vector<32x256xf32>
    %70 = arith.addf %30, %37 : vector<32x256xf32>
    %71 = arith.addf %40, %47 : vector<32x256xf32>
    %72 = arith.addf %54, %61 : vector<32x256xf32>
    %73 = arith.addf %69, %70 : vector<32x256xf32>
    %74 = arith.addf %71, %72 : vector<32x256xf32>
    %75 = arith.addf %73, %74 : vector<32x256xf32>
    %76 = arith.addf %75, %68 : vector<32x256xf32>
    %c0_18 = arith.constant 0 : index
    %c0_19 = arith.constant 0 : index
    %77 = vector.load %arg5[%c0_18, %c0_19] : memref<32x1xf32, #tpu.memory_space<vmem>>, vector<32x1xf32>
    %78 = vector.broadcast %77 : vector<32x1xf32> to vector<32x256xf32>
    %79 = arith.addf %76, %78 : vector<32x256xf32>
    %cst_20 = arith.constant 0.000000e+00 : f32
    %80 = vector.broadcast %cst_20 : f32 to vector<32x256xf32>
    %81 = arith.maximumf %79, %80 : vector<32x256xf32>
    %c0_21 = arith.constant 0 : index
    %c0_22 = arith.constant 0 : index
    %82 = vector.load %arg6[%c0_21, %c0_22] : memref<8x32xf32, #tpu.memory_space<vmem>>, vector<8x32xf32>
    %cst_23 = arith.constant dense<0.000000e+00> : vector<8x256xf32>
    %83 = tpu.matmul %82, %81, %cst_23 {dimension_numbers = #tpu.dot_dimension_numbers<[1], [0], [0], [1], [0, 0, 1, 1], [], []>} : vector<8x32xf32>, vector<32x256xf32>, vector<8x256xf32> -> vector<8x256xf32>
    %c0_24 = arith.constant 0 : index
    %c0_25 = arith.constant 0 : index
    %84 = vector.load %arg7[%c0_24, %c0_25] : memref<8x1xf32, #tpu.memory_space<vmem>>, vector<8x1xf32>
    %85 = vector.broadcast %84 : vector<8x1xf32> to vector<8x256xf32>
    %86 = arith.addf %83, %85 : vector<8x256xf32>
    %87 = arith.negf %86 : vector<8x256xf32>
    %88 = math.exp %87 : vector<8x256xf32>
    %cst_26 = arith.constant 1.000000e+00 : f32
    %89 = vector.broadcast %cst_26 : f32 to vector<8x256xf32>
    %90 = arith.addf %89, %88 : vector<8x256xf32>
    %91 = arith.divf %89, %90 : vector<8x256xf32>
    %92 = arith.addf %1, %91 : vector<8x256xf32>
    %c0_27 = arith.constant 0 : index
    %c0_28 = arith.constant 0 : index
    %c0_29 = arith.constant 0 : index
    %93 = vector.load %arg9[%c0_27, %c0_28, %c0_29] : memref<1x8x256xf32, #tpu.memory_space<vmem>>, vector<1x8x256xf32>
    %94 = vector.shape_cast %93 : vector<1x8x256xf32> to vector<8x256xf32>
    %95 = vector.shape_cast %92 : vector<8x256xf32> to vector<1x8x256xf32>
    tpu.vector_store %arg9[%c0_27, %c0_28, %c0_29], %95 {strides = array<i32>} : memref<1x8x256xf32, #tpu.memory_space<vmem>>, vector<1x8x256xf32>,
    return
  }
  func.func @transform_0(%arg0: i32) -> (i32, i32, i32) {
    %c0_i32 = arith.constant 0 : i32
    %c0_i32_0 = arith.constant 0 : i32
    %c0_i32_1 = arith.constant 0 : i32
    return %arg0, %c0_i32, %c0_i32_0 : i32, i32, i32
  }
  func.func @transform_1(%arg0: i32) -> (i32, i32) {
    %c0_i32 = arith.constant 0 : i32
    %c0_i32_0 = arith.constant 0 : i32
    %c0_i32_1 = arith.constant 0 : i32
    return %c0_i32, %c0_i32_0 : i32, i32
  }
  func.func @transform_2(%arg0: i32) -> (i32, i32) {
    %c0_i32 = arith.constant 0 : i32
    %c0_i32_0 = arith.constant 0 : i32
    %c0_i32_1 = arith.constant 0 : i32
    return %c0_i32, %c0_i32_0 : i32, i32
  }
  func.func @transform_3(%arg0: i32) -> (i32, i32) {
    %c0_i32 = arith.constant 0 : i32
    %c0_i32_0 = arith.constant 0 : i32
    %c0_i32_1 = arith.constant 0 : i32
    return %c0_i32, %c0_i32_0 : i32, i32
  }
  func.func @transform_4(%arg0: i32) -> (i32, i32) {
    %c0_i32 = arith.constant 0 : i32
    %c0_i32_0 = arith.constant 0 : i32
    %c0_i32_1 = arith.constant 0 : i32
    return %c0_i32, %c0_i32_0 : i32, i32
  }
  func.func @transform_5(%arg0: i32) -> (i32, i32) {
    %c0_i32 = arith.constant 0 : i32
    %c0_i32_0 = arith.constant 0 : i32
    %c0_i32_1 = arith.constant 0 : i32
    return %c0_i32, %c0_i32_0 : i32, i32
  }
  func.func @transform_6(%arg0: i32) -> (i32, i32) {
    %c0_i32 = arith.constant 0 : i32
    %c0_i32_0 = arith.constant 0 : i32
    %c0_i32_1 = arith.constant 0 : i32
    return %c0_i32, %c0_i32_0 : i32, i32
  }
  func.func @transform_7(%arg0: i32) -> (i32, i32) {
    %c0_i32 = arith.constant 0 : i32
    %c0_i32_0 = arith.constant 0 : i32
    %c0_i32_1 = arith.constant 0 : i32
    return %c0_i32, %c0_i32_0 : i32, i32
  }
  func.func @transform_8(%arg0: i32) -> (i32, i32, i32) {
    %c0_i32 = arith.constant 0 : i32
    %c0_i32_0 = arith.constant 0 : i32
    %c0_i32_1 = arith.constant 0 : i32
    return %arg0, %c0_i32, %c0_i32_0 : i32, i32, i32
  }
}

</mosaic_0001>

<llo_original>
// kernel: tile.38
$region0: #{tile.38}
  #allocation0 [shape = 's32[1]{0}', space=sflag, size = 0x4, scoped, tag = 'scoped memory for tile.38']
  %s0 = inlined_call_operand.vmem [shape: f32[4], index: 0, kind: input, shape index: {}]
  %s1 = inlined_call_operand.vmem [shape: f32[2,4], index: 1, kind: output, shape index: {}]
  // Predicated region
  $region2: #{tile.38} parent=0 // pred_check
    _
  $region3: #{tile.38} parent=0 // pred_check_branch
    %3 = sbr.rel (0) target = $region5
  $region4: #{tile.38} parent=0 // pred_region
    _
  $region5: #{tile.38} parent=0 // pred_fallthru
    _
  %v4 = vld [vmem:[%s0] ss:$0 sm:$0xff]
  %5 = vst [vmem:[%s1] sm:$0x3] %v4

// kernel: tile.28
$region0: #{tile.28}
  #allocation0 [shape = 's32[1]{0}', space=sflag, size = 0x4, scoped, tag = 'scoped memory for tile.28']
  %s0 = inlined_call_operand.vmem [shape: f32[16], index: 0, kind: input, shape index: {}]
  %s1 = inlined_call_operand.vmem [shape: f32[2,16], index: 1, kind: output, shape index: {}]
  // Predicated region
  $region2: #{tile.28} parent=0 // pred_check
    _
  $region3: #{tile.28} parent=0 // pred_check_branch
    %3 = sbr.rel (0) target = $region5
  $region4: #{tile.28} parent=0 // pred_region
    _
  $region5: #{tile.28} parent=0 // pred_fallthru
    _
  %v4 = vld [vmem:[%s0] ss:$0 sm:$0xff]
  %5 = vst [vmem:[%s1] sm:$0x3] %v4

// kernel: tile.2
$region0: #{tile.2}
  %s0 = inlined_call_operand.vmem [shape: f32[2,4], index: 0, kind: input, shape index: {}]
  %s1 = inlined_call_operand.vmem [shape: f32[8,1], index: 1, kind: output, shape index: {}]
  $region1: #{tile.2} parent=0
    #allocation0 [shape = 'u8[4096]{0}', space=vmem, size = 0x1000, scoped, tag = 'scoped mem for input reshape']
    %s3 = sshllo.u32 0, 2
    %v4 = vld [vmem:[%s0] sm:%s3]
    %5 = vst [vmem:[#allocation0] sm:%s3] %v4
    %v6 = vld [vmem:[#allocation0] sm:$0x3]
    %vm7 = vcmask 7168
    %8 = vst.msk [vmem:[%s1] ss:$4 sm:$0x3] %vm7, %v6
    %v9 = vld [vmem:[#allocation0] sm:$0x3]
    %10 = vrot.lane.b32.xlu0 %v9, 127
    %v11 = vpop.permute.xlu0 %10
    %vm12 = vcmask 7168
    %s13 = scalar_lea.vmem %s1, 1
    %14 = vst.msk [vmem:[%s13] ss:$4 sm:$0x3] %vm12, %v11
    %v15 = vld [vmem:[#allocation0] sm:$0x3]
    %16 = vrot.lane.b32.xlu0 %v15, 126
    %v17 = vpop.permute.xlu0 %16
    %vm18 = vcmask 7168
    %s19 = scalar_lea.vmem %s1, 2
    %20 = vst.msk [vmem:[%s19] ss:$4 sm:$0x3] %vm18, %v17
    %v21 = vld [vmem:[#allocation0] sm:$0x3]
    %22 = vrot.lane.b32.xlu0 %v21, 125
    %v23 = vpop.permute.xlu0 %22
    %vm24 = vcmask 7168
    %s25 = scalar_lea.vmem %s1, 3
    %26 = vst.msk [vmem:[%s25] ss:$4 sm:$0x3] %vm24, %v23

// kernel: tile.1
$region0: #{tile.1}
  %s0 = inlined_call_operand.vmem [shape: f32[2,16], index: 0, kind: input, shape index: {}]
  %s1 = inlined_call_operand.vmem [shape: f32[32,1], index: 1, kind: output, shape index: {}]
  $region1: #{tile.1} parent=0
    #allocation0 [shape = 'u8[4096]{0}', space=vmem, size = 0x1000, scoped, tag = 'scoped mem for input reshape']
    %s3 = sshllo.u32 0, 2
    %v4 = vld [vmem:[%s0] sm:%s3]
    %5 = vst [vmem:[#allocation0] sm:%s3] %v4
    %v6 = vld [vmem:[#allocation0] sm:$0x3]
    %vm7 = vcmask 7168
    %8 = vst.msk [vmem:[%s1] ss:$16 sm:$0x3] %vm7, %v6
    %v9 = vld [vmem:[#allocation0] sm:$0x3]
    %10 = vrot.lane.b32.xlu0 %v9, 127
    %v11 = vpop.permute.xlu0 %10
    %vm12 = vcmask 7168
    %s13 = scalar_lea.vmem %s1, 1
    %14 = vst.msk [vmem:[%s13] ss:$16 sm:$0x3] %vm12, %v11
    %v15 = vld [vmem:[#allocation0] sm:$0x3]
    %16 = vrot.lane.b32.xlu0 %v15, 126
    %v17 = vpop.permute.xlu0 %16
    %vm18 = vcmask 7168
    %s19 = scalar_lea.vmem %s1, 2
    %20 = vst.msk [vmem:[%s19] ss:$16 sm:$0x3] %vm18, %v17
    %v21 = vld [vmem:[#allocation0] sm:$0x3]
    %22 = vrot.lane.b32.xlu0 %v21, 125
    %v23 = vpop.permute.xlu0 %22
    %vm24 = vcmask 7168
    %s25 = scalar_lea.vmem %s1, 3
    %26 = vst.msk [vmem:[%s25] ss:$16 sm:$0x3] %vm24, %v23
    %v27 = vld [vmem:[#allocation0] sm:$0x3]
    %28 = vrot.lane.b32.xlu0 %v27, 124
    %v29 = vpop.permute.xlu0 %28
    %vm30 = vcmask 7168
    %s31 = scalar_lea.vmem %s1, 4
    %32 = vst.msk [vmem:[%s31] ss:$16 sm:$0x3] %vm30, %v29
    %v33 = vld [vmem:[#allocation0] sm:$0x3]
    %34 = vrot.lane.b32.xlu0 %v33, 123
    %v35 = vpop.permute.xlu0 %34
    %vm36 = vcmask 7168
    %s37 = scalar_lea.vmem %s1, 5
    %38 = vst.msk [vmem:[%s37] ss:$16 sm:$0x3] %vm36, %v35
    %v39 = vld [vmem:[#allocation0] sm:$0x3]
    %40 = vrot.lane.b32.xlu0 %v39, 122
    %v41 = vpop.permute.xlu0 %40
    %vm42 = vcmask 7168
    %s43 = scalar_lea.vmem %s1, 6
    %44 = vst.msk [vmem:[%s43] ss:$16 sm:$0x3] %vm42, %v41
    %v45 = vld [vmem:[#allocation0] sm:$0x3]
    %46 = vrot.lane.b32.xlu0 %v45, 121
    %v47 = vpop.permute.xlu0 %46
    %vm48 = vcmask 7168
    %s49 = scalar_lea.vmem %s1, 7
    %50 = vst.msk [vmem:[%s49] ss:$16 sm:$0x3] %vm48, %v47
    %v51 = vld [vmem:[#allocation0] sm:$0x3]
    %52 = vrot.lane.b32.xlu0 %v51, 120
    %v53 = vpop.permute.xlu0 %52
    %vm54 = vcmask 7168
    %s55 = scalar_lea.vmem %s1, 8
    %56 = vst.msk [vmem:[%s55] ss:$16 sm:$0x3] %vm54, %v53
    %v57 = vld [vmem:[#allocation0] sm:$0x3]
    %58 = vrot.lane.b32.xlu0 %v57, 119
    %v59 = vpop.permute.xlu0 %58
    %vm60 = vcmask 7168
    %s61 = scalar_lea.vmem %s1, 9
    %62 = vst.msk [vmem:[%s61] ss:$16 sm:$0x3] %vm60, %v59
    %v63 = vld [vmem:[#allocation0] sm:$0x3]
    %64 = vrot.lane.b32.xlu0 %v63, 118
    %v65 = vpop.permute.xlu0 %64
    %vm66 = vcmask 7168
    %s67 = scalar_lea.vmem %s1, 10
    %68 = vst.msk [vmem:[%s67] ss:$16 sm:$0x3] %vm66, %v65
    %v69 = vld [vmem:[#allocation0] sm:$0x3]
    %70 = vrot.lane.b32.xlu0 %v69, 117
    %v71 = vpop.permute.xlu0 %70
    %vm72 = vcmask 7168
    %s73 = scalar_lea.vmem %s1, 11
    %74 = vst.msk [vmem:[%s73] ss:$16 sm:$0x3] %vm72, %v71
    %v75 = vld [vmem:[#allocation0] sm:$0x3]
    %76 = vrot.lane.b32.xlu0 %v75, 116
    %v77 = vpop.permute.xlu0 %76
    %vm78 = vcmask 7168
    %s79 = scalar_lea.vmem %s1, 12
    %80 = vst.msk [vmem:[%s79] ss:$16 sm:$0x3] %vm78, %v77
    %v81 = vld [vmem:[#allocation0] sm:$0x3]
    %82 = vrot.lane.b32.xlu0 %v81, 115
    %v83 = vpop.permute.xlu0 %82
    %vm84 = vcmask 7168
    %s85 = scalar_lea.vmem %s1, 13
    %86 = vst.msk [vmem:[%s85] ss:$16 sm:$0x3] %vm84, %v83
    %v87 = vld [vmem:[#allocation0] sm:$0x3]
    %88 = vrot.lane.b32.xlu0 %v87, 114
    %v89 = vpop.permute.xlu0 %88
    %vm90 = vcmask 7168
    %s91 = scalar_lea.vmem %s1, 14
    %92 = vst.msk [vmem:[%s91] ss:$16 sm:$0x3] %vm90, %v89
    %v93 = vld [vmem:[#allocation0] sm:$0x3]
    %94 = vrot.lane.b32.xlu0 %v93, 113
    %v95 = vpop.permute.xlu0 %94
    %vm96 = vcmask 7168
    %s97 = scalar_lea.vmem %s1, 15
    %98 = vst.msk [vmem:[%s97] ss:$16 sm:$0x3] %vm96, %v95

// kernel: semantic_response_adapter_pallas.1
$region0: #{semantic_response_adapter_pallas.1}
  #allocation0 [shape = 'u32[]', space=smem, size = 0x4, offset = 0x4, fixed_abs, tag = 'smem constant byte address 0x4 - core index']
  #allocation1 [shape = 'u32[144,128]{1,0:T(1,128)}', space=vmem, size = 0x12000, scoped, tag = 'internal scratch']
  %s0 = inlined_call_operand.vmem [shape: f32[1,8,256], index: 0, kind: input, shape index: {}]
  %s1 = inlined_call_operand.vmem [shape: f32[32,8], index: 1, kind: input, shape index: {}]
  %s2 = inlined_call_operand.vmem [shape: f32[32,1], index: 2, kind: input, shape index: {}]
  %s3 = inlined_call_operand.vmem [shape: f32[32,9], index: 3, kind: input, shape index: {}]
  %s4 = inlined_call_operand.vmem [shape: f32[32,1], index: 4, kind: input, shape index: {}]
  %s5 = inlined_call_operand.vmem [shape: f32[8,32], index: 5, kind: input, shape index: {}]
  %s6 = inlined_call_operand.vmem [shape: f32[8,1], index: 6, kind: input, shape index: {}]
  %s7 = inlined_call_operand.vmem [shape: f32[9,256], index: 7, kind: input, shape index: {}]
  %s8 = inlined_call_operand.vmem [shape: f32[1,8,256], index: 8, kind: output, shape index: {}]
  %s9 = sld [smem:[#allocation0]]
  $region42: #{semantic_response_adapter_pallas.1} parent=0
    _
  %s11 = ssub.s32 1, %s9
  %s12 = scalar_select 0, %s11, %s9
  // Predicated region
  $region2: #{semantic_response_adapter_pallas.1} parent=0 // pred_check
    _
  $region3: #{semantic_response_adapter_pallas.1} parent=0 // pred_check_branch
    %14 = sbr.rel (0) target = $region5
  $region4: #{semantic_response_adapter_pallas.1} parent=0 // pred_region
    _
  $region5: #{semantic_response_adapter_pallas.1} parent=0 // pred_fallthru
    _
  // Predicated region
  $region6: #{semantic_response_adapter_pallas.1} parent=0 // pred_check
    _
  $region7: #{semantic_response_adapter_pallas.1} parent=0 // pred_check_branch
    %16 = sbr.rel (0) target = $region9
  $region8: #{semantic_response_adapter_pallas.1} parent=0 // pred_region
    _
  $region9: #{semantic_response_adapter_pallas.1} parent=0 // pred_fallthru
    _
  // Predicated region
  $region10: #{semantic_response_adapter_pallas.1} parent=0 // pred_check
    _
  $region11: #{semantic_response_adapter_pallas.1} parent=0 // pred_check_branch
    %18 = sbr.rel (0) target = $region13
  $region12: #{semantic_response_adapter_pallas.1} parent=0 // pred_region
    _
  $region13: #{semantic_response_adapter_pallas.1} parent=0 // pred_fallthru
    _
  // Predicated region
  $region14: #{semantic_response_adapter_pallas.1} parent=0 // pred_check
    _
  $region15: #{semantic_response_adapter_pallas.1} parent=0 // pred_check_branch
    %20 = sbr.rel (0) target = $region17
  $region16: #{semantic_response_adapter_pallas.1} parent=0 // pred_region
    _
  $region17: #{semantic_response_adapter_pallas.1} parent=0 // pred_fallthru
    _
  // Predicated region
  $region18: #{semantic_response_adapter_pallas.1} parent=0 // pred_check
    _
  $region19: #{semantic_response_adapter_pallas.1} parent=0 // pred_check_branch
    %22 = sbr.rel (0) target = $region21
  $region20: #{semantic_response_adapter_pallas.1} parent=0 // pred_region
    _
  $region21: #{semantic_response_adapter_pallas.1} parent=0 // pred_fallthru
    _
  // Predicated region
  $region22: #{semantic_response_adapter_pallas.1} parent=0 // pred_check
    _
  $region23: #{semantic_response_adapter_pallas.1} parent=0 // pred_check_branch
    %24 = sbr.rel (0) target = $region25
  $region24: #{semantic_response_adapter_pallas.1} parent=0 // pred_region
    _
  $region25: #{semantic_response_adapter_pallas.1} parent=0 // pred_fallthru
    _
  // Predicated region
  $region26: #{semantic_response_adapter_pallas.1} parent=0 // pred_check
    _
  $region27: #{semantic_response_adapter_pallas.1} parent=0 // pred_check_branch
    %26 = sbr.rel (0) target = $region29
  $region28: #{semantic_response_adapter_pallas.1} parent=0 // pred_region
    _
  $region29: #{semantic_response_adapter_pallas.1} parent=0 // pred_fallthru
    _
  // Predicated region
  $region30: #{semantic_response_adapter_pallas.1} parent=0 // pred_check
    _
  $region31: #{semantic_response_adapter_pallas.1} parent=0 // pred_check_branch
    %28 = sbr.rel (0) target = $region33
  $region32: #{semantic_response_adapter_pallas.1} parent=0 // pred_region
    _
  $region33: #{semantic_response_adapter_pallas.1} parent=0 // pred_fallthru
    _
  %v29 = vld [vmem:[%s0] sm:$0xff]
  %v30 = vld [vmem:[%s0 + $0x8] sm:$0xff]
  %v31 = vld [vmem:[%s1] sm:$0xff]
  %v32 = vld [vmem:[%s1 + $0x8] sm:$0xff]
  %v33 = vld [vmem:[%s1 + $0x10] sm:$0xff]
  %v34 = vld [vmem:[%s1 + $0x18] sm:$0xff]
  %v35 = vld [vmem:[%s2] sm:$0xff]
  %v36 = vld [vmem:[%s2 + $0x8] sm:$0xff]
  %v37 = vld [vmem:[%s2 + $0x10] sm:$0xff]
  %v38 = vld [vmem:[%s2 + $0x18] sm:$0xff]
  %40 = vset.pattern.permute.xlu0 0
  %41 = vperm.xlu0 %40, %v35
  %v42 = vpop.permute.xlu0 %41
  %45 = vset.pattern.permute.xlu0 0
  %46 = vperm.xlu0 %45, %v36
  %v47 = vpop.permute.xlu0 %46
  %50 = vset.pattern.permute.xlu0 0
  %51 = vperm.xlu0 %50, %v37
  %v52 = vpop.permute.xlu0 %51
  %55 = vset.pattern.permute.xlu0 0
  %56 = vperm.xlu0 %55, %v38
  %v57 = vpop.permute.xlu0 %56
  %vm59 = vcmask 64512
  %v61 = vsel %vm59, %v31, 0
  %v64 = vsel %vm59, %v32, 0
  %v67 = vsel %vm59, %v33, 0
  %v70 = vsel %vm59, %v34, 0
  %72 = vmatprep.subr.mxu0 %v30
  %73 = vmatpush1.msra.mxu0 %v29
  %74 = vmatprep.subr.mxu0 0.0
  %75 = vmatpush1.msra.mxu0 0.0
  %76 = vmatprep.subr.mxu0 0.0
  %77 = vmatpush1.msra.mxu0 0.0
  %78 = vmatprep.subr.mxu0 0.0
  %79 = vmatpush1.msra.mxu0 0.0
  %80 = vmatprep.subr.mxu0 0.0
  %81 = vmatpush1.msra.mxu0 0.0
  %82 = vmatprep.subr.mxu0 0.0
  %83 = vmatpush1.msra.mxu0 0.0
  %84 = vmatprep.subr.mxu0 0.0
  %85 = vmatpush1.msra.mxu0 0.0
  %86 = vmatprep.subr.mxu0 0.0
  %87 = vmatpush1.msra.mxu0 0.0
  %88 = vmatprep.subr.mxu0 0.0
  %89 = vmatpush1.msra.mxu0 0.0
  %90 = vmatprep.subr.mxu0 0.0
  %91 = vmatpush1.msra.mxu0 0.0
  %92 = vmatprep.subr.mxu0 0.0
  %93 = vmatpush1.msra.mxu0 0.0
  %94 = vmatprep.subr.mxu0 0.0
  %95 = vmatpush1.msra.mxu0 0.0
  %96 = vmatprep.subr.mxu0 0.0
  %97 = vmatpush1.msra.mxu0 0.0
  %98 = vmatprep.subr.mxu0 0.0
  %99 = vmatpush1.msra.mxu0 0.0
  %100 = vmatprep.subr.mxu0 0.0
  %101 = vmatpush1.msra.mxu0 0.0
  %102 = vmatprep.subr.mxu0 0.0
  %103 = vmatpush1.msra.mxu0 0.0
  %104 = vmatprep.subr.mxu0 0.0
  %105 = vmatpush1.msra.mxu0 0.0
  %106 = vmatprep.subr.mxu0 0.0
  %107 = vmatpush1.msra.mxu0 0.0
  %108 = vmatprep.subr.mxu0 0.0
  %109 = vmatpush1.msra.mxu0 0.0
  %110 = vmatprep.subr.mxu0 0.0
  %111 = vmatpush1.msra.mxu0 0.0
  %112 = vmatprep.subr.mxu0 0.0
  %113 = vmatpush1.msra.mxu0 0.0
  %114 = vmatprep.subr.mxu0 0.0
  %115 = vmatpush1.msra.mxu0 0.0
  %116 = vmatprep.subr.mxu0 0.0
  %117 = vmatpush1.msra.mxu0 0.0
  %118 = vmatprep.subr.mxu0 0.0
  %119 = vmatpush1.msra.mxu0 0.0
  %120 = vmatprep.subr.mxu0 0.0
  %121 = vmatpush1.msra.mxu0 0.0
  %122 = vmatprep.subr.mxu0 0.0
  %123 = vmatpush1.msra.mxu0 0.0
  %124 = vmatprep.subr.mxu0 0.0
  %125 = vmatpush1.msra.mxu0 0.0
  %126 = vmatprep.subr.mxu0 0.0
  %127 = vmatpush1.msra.mxu0 0.0
  %128 = vmatprep.subr.mxu0 0.0
  %129 = vmatpush1.msra.mxu0 0.0
  %130 = vmatprep.subr.mxu0 0.0
  %131 = vmatpush1.msra.mxu0 0.0
  %132 = vmatprep.subr.mxu0 0.0
  %133 = vmatpush1.msra.mxu0 0.0
  %134 = vmatprep.subr.mxu0 0.0
  %135 = vmatpush1.msra.mxu0 0.0
  %136 = vmatprep.mubr.f32.mxu0 0.0
  %137 = vmatmul.mubr.f32.gmra.mrb[0].mxu0 %v61
  %v138 = vpop.f32.mrb[0].mxu0
  %v139 = vadd.f32 %v42, %v138
  %v140 = vpop.f32.mrb[0].mxu0
  %v141 = vadd.f32 %v42, %v140
  %142 = vmatprep.mubr.f32.mxu0 0.0
  %143 = vmatmul.mubr.f32.gmra.mrb[0].mxu0 %v64
  %v144 = vpop.f32.mrb[0].mxu0
  %v145 = vadd.f32 %v47, %v144
  %v146 = vpop.f32.mrb[0].mxu0
  %v147 = vadd.f32 %v47, %v146
  %148 = vmatprep.mubr.f32.mxu0 0.0
  %149 = vmatmul.mubr.f32.gmra.mrb[0].mxu0 %v67
  %v150 = vpop.f32.mrb[0].mxu0
  %v151 = vadd.f32 %v52, %v150
  %v152 = vpop.f32.mrb[0].mxu0
  %v153 = vadd.f32 %v52, %v152
  %154 = vmatprep.mubr.f32.mxu0 0.0
  %155 = vmatmul.mubr.f32.gmra.mrb[0].mxu0 %v70
  %v156 = vpop.f32.mrb[0].mxu0
  %v157 = vadd.f32 %v57, %v156
  %v158 = vpop.f32.mrb[0].mxu0
  %v159 = vadd.f32 %v57, %v158
  %160 = vdwg.mxu0
  %v161 = vmax.f32 %v139, 0.0
  %v162 = vmax.f32 %v141, 0.0
  %v163 = vmax.f32 %v145, 0.0
  %v164 = vmax.f32 %v147, 0.0
  %v165 = vmax.f32 %v151, 0.0
  %v166 = vmax.f32 %v153, 0.0
  %v167 = vmax.f32 %v157, 0.0
  %v168 = vmax.f32 %v159, 0.0
  %v169 = vld [vmem:[%s3] sm:$0xff]
  %v170 = vld [vmem:[%s3 + $0x8] sm:$0xff]
  %v171 = vld [vmem:[%s3 + $0x10] sm:$0xff]
  %v172 = vld [vmem:[%s3 + $0x18] sm:$0xff]
  %173 = vrot.lane.b32.xlu0 %v161, 17
  %v174 = vpop.permute.xlu0 %173
  %175 = vrot.lane.b32.xlu0 %v163, 17
  %v176 = vpop.permute.xlu0 %175
  %177 = vrot.lane.b32.xlu0 %v165, 17
  %v178 = vpop.permute.xlu0 %177
  %179 = vrot.lane.b32.xlu0 %v167, 17
  %v180 = vpop.permute.xlu0 %179
  %181 = vrot.lane.b32.xlu0 %v162, 17
  %v182 = vpop.permute.xlu0 %181
  %183 = vrot.lane.b32.xlu0 %v164, 17
  %v184 = vpop.permute.xlu0 %183
  %185 = vrot.lane.b32.xlu0 %v166, 17
  %v186 = vpop.permute.xlu0 %185
  %187 = vrot.lane.b32.xlu0 %v168, 17
  %v188 = vpop.permute.xlu0 %187
  %v189 = vlaneseq
  %v190 = vand.u32 %v189, 127
  %vm191 = vcmp.lt.s32.totalorder %v190, 17
  %v192 = vsel %vm191, %v174, %v182
  %v193 = vsel %vm191, %v176, %v184
  %v194 = vsel %vm191, %v178, %v186
  %v195 = vsel %vm191, %v180, %v188
  %v196 = vsel %vm191, %v182, %v174
  %v197 = vsel %vm191, %v184, %v176
  %v198 = vsel %vm191, %v186, %v178
  %v199 = vsel %vm191, %v188, %v180
  %v200 = vld [vmem:[%s7] ss:$8 sm:$0x3]
  %v202 = vlaneseq
  %v203 = vshrl.u32 %v202, 7
  %v204 = vsub.s32 0, %v203
  %v205 = vrot.slane %v200, %v204
  %v206 = vlaneseq
  %v207 = vshrl.u32 %v206, 7
  %v208 = vsub.s32 1, %v207
  %v209 = vrot.slane %v200, %v208
  %v212 = vmul.f32 %v196, %v205
  %v213 = vmul.f32 %v192, %v209
  %v214 = vmul.f32 %v197, %v205
  %v215 = vmul.f32 %v193, %v209
  %v216 = vmul.f32 %v198, %v205
  %v217 = vmul.f32 %v194, %v209
  %v218 = vmul.f32 %v199, %v205
  %v219 = vmul.f32 %v195, %v209
  %221 = vset.pattern.permute.xlu0 0
  %222 = vperm.xlu0 %221, %v169
  %v223 = vpop.permute.xlu0 %222
  %226 = vset.pattern.permute.xlu0 0
  %227 = vperm.xlu0 %226, %v170
  %v228 = vpop.permute.xlu0 %227
  %231 = vset.pattern.permute.xlu0 0
  %232 = vperm.xlu0 %231, %v171
  %v233 = vpop.permute.xlu0 %232
  %236 = vset.pattern.permute.xlu0 0
  %237 = vperm.xlu0 %236, %v172
  %v238 = vpop.permute.xlu0 %237
  %v240 = vmul.f32 %v212, %v223
  %v241 = vmul.f32 %v213, %v223
  %v242 = vmul.f32 %v214, %v228
  %v243 = vmul.f32 %v215, %v228
  %v244 = vmul.f32 %v216, %v233
  %v245 = vmul.f32 %v217, %v233
  %v246 = vmul.f32 %v218, %v238
  %v247 = vmul.f32 %v219, %v238
  %248 = vrot.lane.b32.xlu0 %v161, 16
  %v249 = vpop.permute.xlu0 %248
  %250 = vrot.lane.b32.xlu0 %v163, 16
  %v251 = vpop.permute.xlu0 %250
  %252 = vrot.lane.b32.xlu0 %v165, 16
  %v253 = vpop.permute.xlu0 %252
  %254 = vrot.lane.b32.xlu0 %v167, 16
  %v255 = vpop.permute.xlu0 %254
  %256 = vrot.lane.b32.xlu0 %v162, 16
  %v257 = vpop.permute.xlu0 %256
  %258 = vrot.lane.b32.xlu0 %v164, 16
  %v259 = vpop.permute.xlu0 %258
  %260 = vrot.lane.b32.xlu0 %v166, 16
  %v261 = vpop.permute.xlu0 %260
  %262 = vrot.lane.b32.xlu0 %v168, 16
  %v263 = vpop.permute.xlu0 %262
  %vm264 = vcmp.lt.s32.totalorder %v190, 16
  %v265 = vsel %vm264, %v249, %v257
  %v266 = vsel %vm264, %v251, %v259
  %v267 = vsel %vm264, %v253, %v261
  %v268 = vsel %vm264, %v255, %v263
  %v269 = vsel %vm264, %v257, %v249
  %v270 = vsel %vm264, %v259, %v251
  %v271 = vsel %vm264, %v261, %v253
  %v272 = vsel %vm264, %v263, %v255
  %s273 = scalar_lea.vmem %s7, 1
  %v274 = vld [vmem:[%s273] ss:$8 sm:$0x3]
  %v276 = vlaneseq
  %v277 = vshrl.u32 %v276, 7
  %v278 = vsub.s32 0, %v277
  %v279 = vrot.slane %v274, %v278
  %v280 = vlaneseq
  %v281 = vshrl.u32 %v280, 7
  %v282 = vsub.s32 1, %v281
  %v283 = vrot.slane %v274, %v282
  %v286 = vmul.f32 %v269, %v279
  %v287 = vmul.f32 %v265, %v283
  %v288 = vmul.f32 %v270, %v279
  %v289 = vmul.f32 %v266, %v283
  %v290 = vmul.f32 %v271, %v279
  %v291 = vmul.f32 %v267, %v283
  %v292 = vmul.f32 %v272, %v279
  %v293 = vmul.f32 %v268, %v283
  %294 = vset.pattern.permute.xlu0 1
  %295 = vperm.xlu0 %294, %v169
  %v296 = vpop.permute.xlu0 %295
  %298 = vset.pattern.permute.xlu0 1
  %299 = vperm.xlu0 %298, %v170
  %v300 = vpop.permute.xlu0 %299
  %302 = vset.pattern.permute.xlu0 1
  %303 = vperm.xlu0 %302, %v171
  %v304 = vpop.permute.xlu0 %303
  %306 = vset.pattern.permute.xlu0 1
  %307 = vperm.xlu0 %306, %v172
  %v308 = vpop.permute.xlu0 %307
  %v310 = vmul.f32 %v286, %v296
  %v311 = vmul.f32 %v287, %v296
  %v312 = vmul.f32 %v288, %v300
  %v313 = vmul.f32 %v289, %v300
  %v314 = vmul.f32 %v290, %v304
  %v315 = vmul.f32 %v291, %v304
  %v316 = vmul.f32 %v292, %v308
  %v317 = vmul.f32 %v293, %v308
  %318 = vrot.lane.b32.xlu0 %v161, 15
  %v319 = vpop.permute.xlu0 %318
  %320 = vrot.lane.b32.xlu0 %v163, 15
  %v321 = vpop.permute.xlu0 %320
  %322 = vrot.lane.b32.xlu0 %v165, 15
  %v323 = vpop.permute.xlu0 %322
  %324 = vrot.lane.b32.xlu0 %v167, 15
  %v325 = vpop.permute.xlu0 %324
  %326 = vrot.lane.b32.xlu0 %v162, 15
  %v327 = vpop.permute.xlu0 %326
  %328 = vrot.lane.b32.xlu0 %v164, 15
  %v329 = vpop.permute.xlu0 %328
  %330 = vrot.lane.b32.xlu0 %v166, 15
  %v331 = vpop.permute.xlu0 %330
  %332 = vrot.lane.b32.xlu0 %v168, 15
  %v333 = vpop.permute.xlu0 %332
  %vm334 = vcmp.lt.s32.totalorder %v190, 15
  %v335 = vsel %vm334, %v319, %v327
  %v336 = vsel %vm334, %v321, %v329
  %v337 = vsel %vm334, %v323, %v331
  %v338 = vsel %vm334, %v325, %v333
  %v339 = vsel %vm334, %v327, %v319
  %v340 = vsel %vm334, %v329, %v321
  %v341 = vsel %vm334, %v331, %v323
  %v342 = vsel %vm334, %v333, %v325
  %s343 = scalar_lea.vmem %s7, 2
  %v344 = vld [vmem:[%s343] ss:$8 sm:$0x3]
  %v346 = vlaneseq
  %v347 = vshrl.u32 %v346, 7
  %v348 = vsub.s32 0, %v347
  %v349 = vrot.slane %v344, %v348
  %v350 = vlaneseq
  %v351 = vshrl.u32 %v350, 7
  %v352 = vsub.s32 1, %v351
  %v353 = vrot.slane %v344, %v352
  %v356 = vmul.f32 %v339, %v349
  %v357 = vmul.f32 %v335, %v353
  %v358 = vmul.f32 %v340, %v349
  %v359 = vmul.f32 %v336, %v353
  %v360 = vmul.f32 %v341, %v349
  %v361 = vmul.f32 %v337, %v353
  %v362 = vmul.f32 %v342, %v349
  %v363 = vmul.f32 %v338, %v353
  %364 = vset.pattern.permute.xlu0 2
  %365 = vperm.xlu0 %364, %v169
  %v366 = vpop.permute.xlu0 %365
  %368 = vset.pattern.permute.xlu0 2
  %369 = vperm.xlu0 %368, %v170
  %v370 = vpop.permute.xlu0 %369
  %372 = vset.pattern.permute.xlu0 2
  %373 = vperm.xlu0 %372, %v171
  %v374 = vpop.permute.xlu0 %373
  %376 = vset.pattern.permute.xlu0 2
  %377 = vperm.xlu0 %376, %v172
  %v378 = vpop.permute.xlu0 %377
  %v380 = vmul.f32 %v356, %v366
  %v381 = vmul.f32 %v357, %v366
  %v382 = vmul.f32 %v358, %v370
  %v383 = vmul.f32 %v359, %v370
  %v384 = vmul.f32 %v360, %v374
  %v385 = vmul.f32 %v361, %v374
  %v386 = vmul.f32 %v362, %v378
  %v387 = vmul.f32 %v363, %v378
  %388 = vrot.lane.b32.xlu0 %v161, 1
  %v389 = vpop.permute.xlu0 %388
  %390 = vrot.lane.b32.xlu0 %v163, 1
  %v391 = vpop.permute.xlu0 %390
  %392 = vrot.lane.b32.xlu0 %v165, 1
  %v393 = vpop.permute.xlu0 %392
  %394 = vrot.lane.b32.xlu0 %v167, 1
  %v395 = vpop.permute.xlu0 %394
  %396 = vrot.lane.b32.xlu0 %v162, 1
  %v397 = vpop.permute.xlu0 %396
  %398 = vrot.lane.b32.xlu0 %v164, 1
  %v399 = vpop.permute.xlu0 %398
  %400 = vrot.lane.b32.xlu0 %v166, 1
  %v401 = vpop.permute.xlu0 %400
  %402 = vrot.lane.b32.xlu0 %v168, 1
  %v403 = vpop.permute.xlu0 %402
  %vm404 = vcmp.lt.s32.totalorder %v190, 1
  %v405 = vsel %vm404, %v389, %v397
  %v406 = vsel %vm404, %v391, %v399
  %v407 = vsel %vm404, %v393, %v401
  %v408 = vsel %vm404, %v395, %v403
  %v409 = vsel %vm404, %v397, %v389
  %v410 = vsel %vm404, %v399, %v391
  %v411 = vsel %vm404, %v401, %v393
  %v412 = vsel %vm404, %v403, %v395
  %s413 = scalar_lea.vmem %s7, 3
  %v414 = vld [vmem:[%s413] ss:$8 sm:$0x3]
  %v416 = vlaneseq
  %v417 = vshrl.u32 %v416, 7
  %v418 = vsub.s32 0, %v417
  %v419 = vrot.slane %v414, %v418
  %v420 = vlaneseq
  %v421 = vshrl.u32 %v420, 7
  %v422 = vsub.s32 1, %v421
  %v423 = vrot.slane %v414, %v422
  %v426 = vmul.f32 %v409, %v419
  %v427 = vmul.f32 %v405, %v423
  %v428 = vmul.f32 %v410, %v419
  %v429 = vmul.f32 %v406, %v423
  %v430 = vmul.f32 %v411, %v419
  %v431 = vmul.f32 %v407, %v423
  %v432 = vmul.f32 %v412, %v419
  %v433 = vmul.f32 %v408, %v423
  %434 = vset.pattern.permute.xlu0 3
  %435 = vperm.xlu0 %434, %v169
  %v436 = vpop.permute.xlu0 %435
  %438 = vset.pattern.permute.xlu0 3
  %439 = vperm.xlu0 %438, %v170
  %v440 = vpop.permute.xlu0 %439
  %442 = vset.pattern.permute.xlu0 3
  %443 = vperm.xlu0 %442, %v171
  %v444 = vpop.permute.xlu0 %443
  %446 = vset.pattern.permute.xlu0 3
  %447 = vperm.xlu0 %446, %v172
  %v448 = vpop.permute.xlu0 %447
  %v450 = vmul.f32 %v426, %v436
  %v451 = vmul.f32 %v427, %v436
  %v452 = vmul.f32 %v428, %v440
  %v453 = vmul.f32 %v429, %v440
  %v454 = vmul.f32 %v430, %v444
  %v455 = vmul.f32 %v431, %v444
  %v456 = vmul.f32 %v432, %v448
  %v457 = vmul.f32 %v433, %v448
  %458 = vset.pattern.permute.xlu0 4
  %459 = vperm.xlu0 %458, %v169
  %v460 = vpop.permute.xlu0 %459
  %462 = vset.pattern.permute.xlu0 4
  %463 = vperm.xlu0 %462, %v170
  %v464 = vpop.permute.xlu0 %463
  %466 = vset.pattern.permute.xlu0 4
  %467 = vperm.xlu0 %466, %v171
  %v468 = vpop.permute.xlu0 %467
  %470 = vset.pattern.permute.xlu0 4
  %471 = vperm.xlu0 %470, %v172
  %v472 = vpop.permute.xlu0 %471
  %v474 = vmul.f32 %v161, %v460
  %v475 = vmul.f32 %v162, %v460
  %v476 = vmul.f32 %v163, %v464
  %v477 = vmul.f32 %v164, %v464
  %v478 = vmul.f32 %v165, %v468
  %v479 = vmul.f32 %v166, %v468
  %v480 = vmul.f32 %v167, %v472
  %v481 = vmul.f32 %v168, %v472
  %482 = vrot.lane.b32.xlu0 %v161, 127
  %v483 = vpop.permute.xlu0 %482
  %484 = vrot.lane.b32.xlu0 %v163, 127
  %v485 = vpop.permute.xlu0 %484
  %486 = vrot.lane.b32.xlu0 %v165, 127
  %v487 = vpop.permute.xlu0 %486
  %488 = vrot.lane.b32.xlu0 %v167, 127
  %v489 = vpop.permute.xlu0 %488
  %490 = vrot.lane.b32.xlu0 %v162, 127
  %v491 = vpop.permute.xlu0 %490
  %492 = vrot.lane.b32.xlu0 %v164, 127
  %v493 = vpop.permute.xlu0 %492
  %494 = vrot.lane.b32.xlu0 %v166, 127
  %v495 = vpop.permute.xlu0 %494
  %496 = vrot.lane.b32.xlu0 %v168, 127
  %v497 = vpop.permute.xlu0 %496
  %vm498 = vcmp.lt.s32.totalorder %v190, 127
  %v499 = vsel %vm498, %v483, %v491
  %v500 = vsel %vm498, %v485, %v493
  %v501 = vsel %vm498, %v487, %v495
  %v502 = vsel %vm498, %v489, %v497
  %v503 = vsel %vm498, %v491, %v483
  %v504 = vsel %vm498, %v493, %v485
  %v505 = vsel %vm498, %v495, %v487
  %v506 = vsel %vm498, %v497, %v489
  %s507 = scalar_lea.vmem %s7, 5
  %v508 = vld [vmem:[%s507] ss:$8 sm:$0x3]
  %v510 = vlaneseq
  %v511 = vshrl.u32 %v510, 7
  %v512 = vsub.s32 0, %v511
  %v513 = vrot.slane %v508, %v512
  %v514 = vlaneseq
  %v515 = vshrl.u32 %v514, 7
  %v516 = vsub.s32 1, %v515
  %v517 = vrot.slane %v508, %v516
  %v520 = vmul.f32 %v499, %v513
  %v521 = vmul.f32 %v503, %v517
  %v522 = vmul.f32 %v500, %v513
  %v523 = vmul.f32 %v504, %v517
  %v524 = vmul.f32 %v501, %v513
  %v525 = vmul.f32 %v505, %v517
  %v526 = vmul.f32 %v502, %v513
  %v527 = vmul.f32 %v506, %v517
  %528 = vset.pattern.permute.xlu0 5
  %529 = vperm.xlu0 %528, %v169
  %v530 = vpop.permute.xlu0 %529
  %532 = vset.pattern.permute.xlu0 5
  %533 = vperm.xlu0 %532, %v170
  %v534 = vpop.permute.xlu0 %533
  %536 = vset.pattern.permute.xlu0 5
  %537 = vperm.xlu0 %536, %v171
  %v538 = vpop.permute.xlu0 %537
  %540 = vset.pattern.permute.xlu0 5
  %541 = vperm.xlu0 %540, %v172
  %v542 = vpop.permute.xlu0 %541
  %v544 = vmul.f32 %v520, %v530
  %v545 = vmul.f32 %v521, %v530
  %v546 = vmul.f32 %v522, %v534
  %v547 = vmul.f32 %v523, %v534
  %v548 = vmul.f32 %v524, %v538
  %v549 = vmul.f32 %v525, %v538
  %v550 = vmul.f32 %v526, %v542
  %v551 = vmul.f32 %v527, %v542
  %552 = vrot.lane.b32.xlu0 %v161, 113
  %v553 = vpop.permute.xlu0 %552
  %554 = vrot.lane.b32.xlu0 %v163, 113
  %v555 = vpop.permute.xlu0 %554
  %556 = vrot.lane.b32.xlu0 %v165, 113
  %v557 = vpop.permute.xlu0 %556
  %558 = vrot.lane.b32.xlu0 %v167, 113
  %v559 = vpop.permute.xlu0 %558
  %560 = vrot.lane.b32.xlu0 %v162, 113
  %v561 = vpop.permute.xlu0 %560
  %562 = vrot.lane.b32.xlu0 %v164, 113
  %v563 = vpop.permute.xlu0 %562
  %564 = vrot.lane.b32.xlu0 %v166, 113
  %v565 = vpop.permute.xlu0 %564
  %566 = vrot.lane.b32.xlu0 %v168, 113
  %v567 = vpop.permute.xlu0 %566
  %vm568 = vcmp.lt.s32.totalorder %v190, 113
  %v569 = vsel %vm568, %v553, %v561
  %v570 = vsel %vm568, %v555, %v563
  %v571 = vsel %vm568, %v557, %v565
  %v572 = vsel %vm568, %v559, %v567
  %v573 = vsel %vm568, %v561, %v553
  %v574 = vsel %vm568, %v563, %v555
  %v575 = vsel %vm568, %v565, %v557
  %v576 = vsel %vm568, %v567, %v559
  %s577 = scalar_lea.vmem %s7, 6
  %v578 = vld [vmem:[%s577] ss:$8 sm:$0x3]
  %v580 = vlaneseq
  %v581 = vshrl.u32 %v580, 7
  %v582 = vsub.s32 0, %v581
  %v583 = vrot.slane %v578, %v582
  %v584 = vlaneseq
  %v585 = vshrl.u32 %v584, 7
  %v586 = vsub.s32 1, %v585
  %v587 = vrot.slane %v578, %v586
  %v590 = vmul.f32 %v569, %v583
  %v591 = vmul.f32 %v573, %v587
  %v592 = vmul.f32 %v570, %v583
  %v593 = vmul.f32 %v574, %v587
  %v594 = vmul.f32 %v571, %v583
  %v595 = vmul.f32 %v575, %v587
  %v596 = vmul.f32 %v572, %v583
  %v597 = vmul.f32 %v576, %v587
  %598 = vset.pattern.permute.xlu0 6
  %599 = vperm.xlu0 %598, %v169
  %v600 = vpop.permute.xlu0 %599
  %602 = vset.pattern.permute.xlu0 6
  %603 = vperm.xlu0 %602, %v170
  %v604 = vpop.permute.xlu0 %603
  %606 = vset.pattern.permute.xlu0 6
  %607 = vperm.xlu0 %606, %v171
  %v608 = vpop.permute.xlu0 %607
  %610 = vset.pattern.permute.xlu0 6
  %611 = vperm.xlu0 %610, %v172
  %v612 = vpop.permute.xlu0 %611
  %v614 = vmul.f32 %v590, %v600
  %v615 = vmul.f32 %v591, %v600
  %v616 = vmul.f32 %v592, %v604
  %v617 = vmul.f32 %v593, %v604
  %v618 = vmul.f32 %v594, %v608
  %v619 = vmul.f32 %v595, %v608
  %v620 = vmul.f32 %v596, %v612
  %v621 = vmul.f32 %v597, %v612
  %622 = vrot.lane.b32.xlu0 %v161, 112
  %v623 = vpop.permute.xlu0 %622
  %624 = vrot.lane.b32.xlu0 %v163, 112
  %v625 = vpop.permute.xlu0 %624
  %626 = vrot.lane.b32.xlu0 %v165, 112
  %v627 = vpop.permute.xlu0 %626
  %628 = vrot.lane.b32.xlu0 %v167, 112
  %v629 = vpop.permute.xlu0 %628
  %630 = vrot.lane.b32.xlu0 %v162, 112
  %v631 = vpop.permute.xlu0 %630
  %632 = vrot.lane.b32.xlu0 %v164, 112
  %v633 = vpop.permute.xlu0 %632
  %634 = vrot.lane.b32.xlu0 %v166, 112
  %v635 = vpop.permute.xlu0 %634
  %636 = vrot.lane.b32.xlu0 %v168, 112
  %v637 = vpop.permute.xlu0 %636
  %vm638 = vcmp.lt.s32.totalorder %v190, 112
  %v639 = vsel %vm638, %v623, %v631
  %v640 = vsel %vm638, %v625, %v633
  %v641 = vsel %vm638, %v627, %v635
  %v642 = vsel %vm638, %v629, %v637
  %v643 = vsel %vm638, %v631, %v623
  %v644 = vsel %vm638, %v633, %v625
  %v645 = vsel %vm638, %v635, %v627
  %v646 = vsel %vm638, %v637, %v629
  %s647 = scalar_lea.vmem %s7, 7
  %v648 = vld [vmem:[%s647] ss:$8 sm:$0x3]
  %v650 = vlaneseq
  %v651 = vshrl.u32 %v650, 7
  %v652 = vsub.s32 0, %v651
  %v653 = vrot.slane %v648, %v652
  %v654 = vlaneseq
  %v655 = vshrl.u32 %v654, 7
  %v656 = vsub.s32 1, %v655
  %v657 = vrot.slane %v648, %v656
  %v660 = vmul.f32 %v639, %v653
  %v661 = vmul.f32 %v643, %v657
  %v662 = vmul.f32 %v640, %v653
  %v663 = vmul.f32 %v644, %v657
  %v664 = vmul.f32 %v641, %v653
  %v665 = vmul.f32 %v645, %v657
  %v666 = vmul.f32 %v642, %v653
  %v667 = vmul.f32 %v646, %v657
  %668 = vset.pattern.permute.xlu0 7
  %669 = vperm.xlu0 %668, %v169
  %v670 = vpop.permute.xlu0 %669
  %672 = vset.pattern.permute.xlu0 7
  %673 = vperm.xlu0 %672, %v170
  %v674 = vpop.permute.xlu0 %673
  %676 = vset.pattern.permute.xlu0 7
  %677 = vperm.xlu0 %676, %v171
  %v678 = vpop.permute.xlu0 %677
  %680 = vset.pattern.permute.xlu0 7
  %681 = vperm.xlu0 %680, %v172
  %v682 = vpop.permute.xlu0 %681
  %v684 = vmul.f32 %v660, %v670
  %v685 = vmul.f32 %v661, %v670
  %v686 = vmul.f32 %v662, %v674
  %v687 = vmul.f32 %v663, %v674
  %v688 = vmul.f32 %v664, %v678
  %v689 = vmul.f32 %v665, %v678
  %v690 = vmul.f32 %v666, %v682
  %v691 = vmul.f32 %v667, %v682
  %692 = vrot.lane.b32.xlu0 %v161, 111
  %v693 = vpop.permute.xlu0 %692
  %694 = vrot.lane.b32.xlu0 %v163, 111
  %v695 = vpop.permute.xlu0 %694
  %696 = vrot.lane.b32.xlu0 %v165, 111
  %v697 = vpop.permute.xlu0 %696
  %698 = vrot.lane.b32.xlu0 %v167, 111
  %v699 = vpop.permute.xlu0 %698
  %700 = vrot.lane.b32.xlu0 %v162, 111
  %v701 = vpop.permute.xlu0 %700
  %702 = vrot.lane.b32.xlu0 %v164, 111
  %v703 = vpop.permute.xlu0 %702
  %704 = vrot.lane.b32.xlu0 %v166, 111
  %v705 = vpop.permute.xlu0 %704
  %706 = vrot.lane.b32.xlu0 %v168, 111
  %v707 = vpop.permute.xlu0 %706
  %vm708 = vcmp.lt.s32.totalorder %v190, 111
  %v709 = vsel %vm708, %v693, %v701
  %v710 = vsel %vm708, %v695, %v703
  %v711 = vsel %vm708, %v697, %v705
  %v712 = vsel %vm708, %v699, %v707
  %v713 = vsel %vm708, %v701, %v693
  %v714 = vsel %vm708, %v703, %v695
  %v715 = vsel %vm708, %v705, %v697
  %v716 = vsel %vm708, %v707, %v699
  %s717 = scalar_lea.vmem %s7, 16
  %v718 = vld [vmem:[%s717] ss:$8 sm:$0x3]
  %v720 = vlaneseq
  %v721 = vshrl.u32 %v720, 7
  %v722 = vsub.s32 0, %v721
  %v723 = vrot.slane %v718, %v722
  %v724 = vlaneseq
  %v725 = vshrl.u32 %v724, 7
  %v726 = vsub.s32 1, %v725
  %v727 = vrot.slane %v718, %v726
  %v730 = vmul.f32 %v709, %v723
  %v731 = vmul.f32 %v713, %v727
  %v732 = vmul.f32 %v710, %v723
  %v733 = vmul.f32 %v714, %v727
  %v734 = vmul.f32 %v711, %v723
  %v735 = vmul.f32 %v715, %v727
  %v736 = vmul.f32 %v712, %v723
  %v737 = vmul.f32 %v716, %v727
  %738 = vset.pattern.permute.xlu0 8
  %739 = vperm.xlu0 %738, %v169
  %v740 = vpop.permute.xlu0 %739
  %742 = vset.pattern.permute.xlu0 8
  %743 = vperm.xlu0 %742, %v170
  %v744 = vpop.permute.xlu0 %743
  %746 = vset.pattern.permute.xlu0 8
  %747 = vperm.xlu0 %746, %v171
  %v748 = vpop.permute.xlu0 %747
  %750 = vset.pattern.permute.xlu0 8
  %751 = vperm.xlu0 %750, %v172
  %v752 = vpop.permute.xlu0 %751
  %v754 = vmul.f32 %v730, %v740
  %v755 = vmul.f32 %v731, %v740
  %v756 = vmul.f32 %v732, %v744
  %v757 = vmul.f32 %v733, %v744
  %v758 = vmul.f32 %v734, %v748
  %v759 = vmul.f32 %v735, %v748
  %v760 = vmul.f32 %v736, %v752
  %v761 = vmul.f32 %v737, %v752
  %v762 = vadd.f32 %v240, %v310
  %v763 = vadd.f32 %v241, %v311
  %v764 = vadd.f32 %v242, %v312
  %v765 = vadd.f32 %v243, %v313
  %v766 = vadd.f32 %v244, %v314
  %v767 = vadd.f32 %v245, %v315
  %v768 = vadd.f32 %v246, %v316
  %v769 = vadd.f32 %v247, %v317
  %v770 = vadd.f32 %v380, %v450
  %v771 = vadd.f32 %v381, %v451
  %v772 = vadd.f32 %v382, %v452
  %v773 = vadd.f32 %v383, %v453
  %v774 = vadd.f32 %v384, %v454
  %v775 = vadd.f32 %v385, %v455
  %v776 = vadd.f32 %v386, %v456
  %v777 = vadd.f32 %v387, %v457
  %v778 = vadd.f32 %v474, %v544
  %v779 = vadd.f32 %v475, %v545
  %v780 = vadd.f32 %v476, %v546
  %v781 = vadd.f32 %v477, %v547
  %v782 = vadd.f32 %v478, %v548
  %v783 = vadd.f32 %v479, %v549
  %v784 = vadd.f32 %v480, %v550
  %v785 = vadd.f32 %v481, %v551
  %v786 = vadd.f32 %v614, %v684
  %v787 = vadd.f32 %v615, %v685
  %v788 = vadd.f32 %v616, %v686
  %v789 = vadd.f32 %v617, %v687
  %v790 = vadd.f32 %v618, %v688
  %v791 = vadd.f32 %v619, %v689
  %v792 = vadd.f32 %v620, %v690
  %v793 = vadd.f32 %v621, %v691
  %v794 = vadd.f32 %v762, %v770
  %v795 = vadd.f32 %v763, %v771
  %v796 = vadd.f32 %v764, %v772
  %v797 = vadd.f32 %v765, %v773
  %v798 = vadd.f32 %v766, %v774
  %v799 = vadd.f32 %v767, %v775
  %v800 = vadd.f32 %v768, %v776
  %v801 = vadd.f32 %v769, %v777
  %v802 = vadd.f32 %v778, %v786
  %v803 = vadd.f32 %v779, %v787
  %v804 = vadd.f32 %v780, %v788
  %v805 = vadd.f32 %v781, %v789
  %v806 = vadd.f32 %v782, %v790
  %v807 = vadd.f32 %v783, %v791
  %v808 = vadd.f32 %v784, %v792
  %v809 = vadd.f32 %v785, %v793
  %v810 = vadd.f32 %v794, %v802
  %v811 = vadd.f32 %v795, %v803
  %v812 = vadd.f32 %v796, %v804
  %v813 = vadd.f32 %v797, %v805
  %v814 = vadd.f32 %v798, %v806
  %v815 = vadd.f32 %v799, %v807
  %v816 = vadd.f32 %v800, %v808
  %v817 = vadd.f32 %v801, %v809
  %v818 = vadd.f32 %v810, %v754
  %v819 = vadd.f32 %v811, %v755
  %v820 = vadd.f32 %v812, %v756
  %v821 = vadd.f32 %v813, %v757
  %v822 = vadd.f32 %v814, %v758
  %v823 = vadd.f32 %v815, %v759
  %v824 = vadd.f32 %v816, %v760
  %v825 = vadd.f32 %v817, %v761
  %v826 = vld [vmem:[%s4] sm:$0xff]
  %v827 = vld [vmem:[%s4 + $0x8] sm:$0xff]
  %v828 = vld [vmem:[%s4 + $0x10] sm:$0xff]
  %v829 = vld [vmem:[%s4 + $0x18] sm:$0xff]
  %831 = vset.pattern.permute.xlu0 0
  %832 = vperm.xlu0 %831, %v826
  %v833 = vpop.permute.xlu0 %832
  %836 = vset.pattern.permute.xlu0 0
  %837 = vperm.xlu0 %836, %v827
  %v838 = vpop.permute.xlu0 %837
  %841 = vset.pattern.permute.xlu0 0
  %842 = vperm.xlu0 %841, %v828
  %v843 = vpop.permute.xlu0 %842
  %846 = vset.pattern.permute.xlu0 0
  %847 = vperm.xlu0 %846, %v829
  %v848 = vpop.permute.xlu0 %847
  %v850 = vadd.f32 %v818, %v833
  %v851 = vadd.f32 %v819, %v833
  %v852 = vadd.f32 %v820, %v838
  %v853 = vadd.f32 %v821, %v838
  %v854 = vadd.f32 %v822, %v843
  %v855 = vadd.f32 %v823, %v843
  %v856 = vadd.f32 %v824, %v848
  %v857 = vadd.f32 %v825, %v848
  %v858 = vmax.f32 %v850, 0.0
  %v859 = vmax.f32 %v851, 0.0
  %v860 = vmax.f32 %v852, 0.0
  %v861 = vmax.f32 %v853, 0.0
  %v862 = vmax.f32 %v854, 0.0
  %v863 = vmax.f32 %v855, 0.0
  %v864 = vmax.f32 %v856, 0.0
  %v865 = vmax.f32 %v857, 0.0
  %v866 = vld [vmem:[%s5] sm:$0xff]
  %v867 = vld [vmem:[%s6] sm:$0xff]
  %869 = vset.pattern.permute.xlu0 0
  %870 = vperm.xlu0 %869, %v867
  %v871 = vpop.permute.xlu0 %870
  %vm873 = vcmask 261120
  %v875 = vsel %vm873, %v866, 0
  %877 = vmatprep.subr.mxu0 %v859
  %878 = vmatpush1.msra.mxu0 %v858
  %879 = vmatprep.subr.mxu0 %v861
  %880 = vmatpush1.msra.mxu0 %v860
  %881 = vmatprep.subr.mxu0 %v863
  %882 = vmatpush1.msra.mxu0 %v862
  %883 = vmatprep.subr.mxu0 %v865
  %884 = vmatpush1.msra.mxu0 %v864
  %885 = vmatprep.subr.mxu0 0.0
  %886 = vmatpush1.msra.mxu0 0.0
  %887 = vmatprep.subr.mxu0 0.0
  %888 = vmatpush1.msra.mxu0 0.0
  %889 = vmatprep.subr.mxu0 0.0
  %890 = vmatpush1.msra.mxu0 0.0
  %891 = vmatprep.subr.mxu0 0.0
  %892 = vmatpush1.msra.mxu0 0.0
  %893 = vmatprep.subr.mxu0 0.0
  %894 = vmatpush1.msra.mxu0 0.0
  %895 = vmatprep.subr.mxu0 0.0
  %896 = vmatpush1.msra.mxu0 0.0
  %897 = vmatprep.subr.mxu0 0.0
  %898 = vmatpush1.msra.mxu0 0.0
  %899 = vmatprep.subr.mxu0 0.0
  %900 = vmatpush1.msra.mxu0 0.0
  %901 = vmatprep.subr.mxu0 0.0
  %902 = vmatpush1.msra.mxu0 0.0
  %903 = vmatprep.subr.mxu0 0.0
  %904 = vmatpush1.msra.mxu0 0.0
  %905 = vmatprep.subr.mxu0 0.0
  %906 = vmatpush1.msra.mxu0 0.0
  %907 = vmatprep.subr.mxu0 0.0
  %908 = vmatpush1.msra.mxu0 0.0
  %909 = vmatprep.subr.mxu0 0.0
  %910 = vmatpush1.msra.mxu0 0.0
  %911 = vmatprep.subr.mxu0 0.0
  %912 = vmatpush1.msra.mxu0 0.0
  %913 = vmatprep.subr.mxu0 0.0
  %914 = vmatpush1.msra.mxu0 0.0
  %915 = vmatprep.subr.mxu0 0.0
  %916 = vmatpush1.msra.mxu0 0.0
  %917 = vmatprep.subr.mxu0 0.0
  %918 = vmatpush1.msra.mxu0 0.0
  %919 = vmatprep.subr.mxu0 0.0
  %920 = vmatpush1.msra.mxu0 0.0
  %921 = vmatprep.subr.mxu0 0.0
  %922 = vmatpush1.msra.mxu0 0.0
  %923 = vmatprep.subr.mxu0 0.0
  %924 = vmatpush1.msra.mxu0 0.0
  %925 = vmatprep.subr.mxu0 0.0
  %926 = vmatpush1.msra.mxu0 0.0
  %927 = vmatprep.subr.mxu0 0.0
  %928 = vmatpush1.msra.mxu0 0.0
  %929 = vmatprep.subr.mxu0 0.0
  %930 = vmatpush1.msra.mxu0 0.0
  %931 = vmatprep.subr.mxu0 0.0
  %932 = vmatpush1.msra.mxu0 0.0
  %933 = vmatprep.subr.mxu0 0.0
  %934 = vmatpush1.msra.mxu0 0.0
  %935 = vmatprep.subr.mxu0 0.0
  %936 = vmatpush1.msra.mxu0 0.0
  %937 = vmatprep.subr.mxu0 0.0
  %938 = vmatpush1.msra.mxu0 0.0
  %939 = vmatprep.subr.mxu0 0.0
  %940 = vmatpush1.msra.mxu0 0.0
  %941 = vmatprep.mubr.f32.mxu0 0.0
  %942 = vmatmul.mubr.f32.gmra.mrb[0].mxu0 %v875
  %v943 = vpop.f32.mrb[0].mxu0
  %v944 = vadd.f32 %v871, %v943
  %v945 = vpop.f32.mrb[0].mxu0
  %v946 = vadd.f32 %v871, %v945
  %947 = vdwg.mxu0
  %v948 = vxor.u32 %v944, 2147483648
  %v949 = vxor.u32 %v946, 2147483648
  %v950 = vmul.f32 %v948, 1.442695
  %v951 = vpow.pop %v950
  %v952 = vmul.f32 %v949, 1.442695
  %v953 = vpow.pop %v952
  %v954 = vadd.f32 %v951, 1.0
  %v955 = vadd.f32 %v953, 1.0
  %v956 = vrcp.pop %v954
  %v957 = vmul.f32 1.0, %v956
  %v958 = vrcp.pop %v955
  %v959 = vmul.f32 1.0, %v958
  %v960 = vadd.f32 %v29, %v957
  %v961 = vadd.f32 %v30, %v959
  %962 = vst [vmem:[%s8] sm:$0xff] %v960
  %963 = vst [vmem:[%s8 + $0x8] sm:$0xff] %v961
  // Predicated region
  $region34: #{semantic_response_adapter_pallas.1} parent=0 // pred_check
    _
  $region35: #{semantic_response_adapter_pallas.1} parent=0 // pred_check_branch
    %965 = sbr.rel (0) target = $region37
  $region36: #{semantic_response_adapter_pallas.1} parent=0 // pred_region
    _
  $region37: #{semantic_response_adapter_pallas.1} parent=0 // pred_fallthru
    _
  // Predicated region
  $region38: #{semantic_response_adapter_pallas.1} parent=0 // pred_check
    _
  $region39: #{semantic_response_adapter_pallas.1} parent=0 // pred_check_branch
    %967 = sbr.rel (0) target = $region41
  $region40: #{semantic_response_adapter_pallas.1} parent=0 // pred_region
    _
  $region41: #{semantic_response_adapter_pallas.1} parent=0 // pred_fallthru
    _

</llo_original>
